<compile_context>
chip_gen: v5e
topology: v5e:2x2
jax: 0.10.0
libtpu: 0.0.40
codegen_flags: <defaults>
</compile_context>

<pallas_src>
import functools
import math

import jax
import jax.numpy as jnp
import numpy as np
from jax.experimental import pallas as pl
from jax.experimental.pallas import tpu as pltpu

_LANE = 128


def _gemm_bias_kernel(x_ref, w_ref, b_ref, o_ref):
    """One grid step = one (phase, batch, M-tile).

    x_ref: (TM, K)   im2col patch tile (compute dtype)
    w_ref: (K, Cp)   per-phase weight, Cout zero-padded to Cp=128*ceil(Cout/128)
    b_ref: (1, Cp)   bias (f32)
    o_ref: (TM, Cp)  output tile (f32) -- single lane-dense store
    """
    acc = jnp.dot(x_ref[...], w_ref[...], preferred_element_type=jnp.float32)
    o_ref[...] = (acc + b_ref[...]).astype(o_ref.dtype)


def _pick_m_tile(m):
    # 256-aligned tiles fill the v6e/v7x 256x256 MXU; fall back to smaller divisors.
    for tm in (512, 256, 128, 64, 32, 16, 8):
        if m % tm == 0:
            return tm
    return m


def elr_conv_transpose2d(x, weight_, bias, *, stride, padding,
                         compute_dtype=jnp.bfloat16):
    """Forward of ELRConvT2d.

    x:       (N, Cin, H, W)      NCHW, float32
    weight_: (Cin, Cout, kH, kW) raw (un-scaled) parameter, N(0,1) init
    bias:    (Cout,)
    compute_dtype: dtype of the MXU operands (bf16 fast path, f32 exact path).
    """
    N, Cin, H, W = x.shape
    wCin, Cout, kH, kW = weight_.shape
    assert wCin == Cin
    s, p = int(stride), int(padding)

    # ELR scaling: fanin = weight.size(1) * weight[0][0].numel() = Cout * kH * kW
    # (faithful to the PyTorch ConvTranspose2d layout quirk).
    scale = math.sqrt(2.0 / (Cout * kH * kW))
    w_scaled = weight_.astype(jnp.float32) * scale          # (Cin, Cout, kH, kW)

    Ho = (H - 1) * s - 2 * p + kH
    Wo = (W - 1) * s - 2 * p + kW
    # TODO(synk): output_padding / dilation / groups of ConvTranspose2d not handled.

    # ---- sub-pixel (phase) decomposition geometry (all static Python ints) ----
    # Output rows with residue rh (mod s) use taps kh == (rh + p) (mod s); the
    # contributing input row for tap kh = ph + t*s at output row rh + m*s is
    # q0 + m - t with q0 = (rh + p) // s.
    nTh = -(-kH // s)                      # taps per phase (max over phases)
    nTw = -(-kW // s)
    Mh = -(-Ho // s)                       # output rows per phase (max over phases)
    Mw = -(-Wo // s)
    q0h = [(rh + p) // s for rh in range(s)]
    q0w = [(rw + p) // s for rw in range(s)]
    pad_lo_h = max(0, nTh - 1 - min(q0h))
    pad_hi_h = max(0, max(q0h) + Mh - H)
    pad_lo_w = max(0, nTw - 1 - min(q0w))
    pad_hi_w = max(0, max(q0w) + Mw - W)

    x_nhwc = jnp.transpose(x, (0, 2, 3, 1)).astype(compute_dtype)     # (N, H, W, Cin)
    x_pad = jnp.pad(x_nhwc,
                    ((0, 0), (pad_lo_h, pad_hi_h), (pad_lo_w, pad_hi_w), (0, 0)))

    K = nTh * nTw * Cin
    Cp = -(-Cout // _LANE) * _LANE         # lane-dense output channels

    patches = []   # per phase: (N, Mh*Mw, K)
    weights = []   # per phase: (K, Cp)
    for rh in range(s):                    # rh = output-row residue (interleave order)
        ph_h = (rh + p) % s
        bh = q0h[rh] - (nTh - 1) + pad_lo_h
        for rw in range(s):
            ph_w = (rw + p) % s
            bw = q0w[rw] - (nTw - 1) + pad_lo_w
            slabs, wtaps = [], []
            for th in range(nTh):
                kh = ph_h + (nTh - 1 - th) * s          # flipped tap order
                for tw in range(nTw):
                    kw_ = ph_w + (nTw - 1 - tw) * s
                    slabs.append(x_pad[:, bh + th: bh + th + Mh,
                                       bw + tw: bw + tw + Mw, :])   # (N, Mh, Mw, Cin)
                    if kh < kH and kw_ < kW:
                        wtaps.append(w_scaled[:, :, kh, kw_])       # (Cin, Cout)
                    else:                                           # padded (fake) tap
                        wtaps.append(jnp.zeros((Cin, Cout), jnp.float32))
            patch = jnp.concatenate(slabs, axis=-1)                 # (N, Mh, Mw, K)
            patches.append(patch.reshape(N, Mh * Mw, K))
            wmat = jnp.concatenate(wtaps, axis=0)                   # (K, Cout)
            weights.append(jnp.pad(wmat, ((0, 0), (0, Cp - Cout))))

    P = s * s
    patches = jnp.stack(patches, axis=0)                            # (P, N, M, K)
    weights = jnp.stack(weights, axis=0).astype(compute_dtype)      # (P, K, Cp)
    b_pad = jnp.pad(bias.astype(jnp.float32), (0, Cp - Cout)).reshape(1, Cp)

    M = Mh * Mw
    TM = _pick_m_tile(M)
    grid = (P, N, M // TM)

    out_k = pl.pallas_call(
        _gemm_bias_kernel,
        out_shape=jax.ShapeDtypeStruct((P, N, M, Cp), jnp.float32),
        grid_spec=pltpu.PrefetchScalarGridSpec(
            num_scalar_prefetch=0,
            grid=grid,
            in_specs=[
                pl.BlockSpec((pl.Squeezed(), pl.Squeezed(), TM, K),
                             lambda pi, ni, mi: (pi, ni, mi, 0)),
                pl.BlockSpec((pl.Squeezed(), K, Cp),
                             lambda pi, ni, mi: (pi, 0, 0)),
                pl.BlockSpec((1, Cp),
                             lambda pi, ni, mi: (0, 0)),
            ],
            out_specs=pl.BlockSpec((pl.Squeezed(), pl.Squeezed(), TM, Cp),
                                   lambda pi, ni, mi: (pi, ni, mi, 0)),
        ),
        compiler_params=pltpu.CompilerParams(
            dimension_semantics=("parallel", "parallel", "parallel")),
    )(patches, weights, b_pad)

    # Interleave phases back and emit NCHW directly:
    #   out[n, co, mh*s + rh, mw*s + rw] = out_k[rh*s + rw, n, mh*Mw + mw, co]
    out_k = out_k.reshape(s, s, N, Mh, Mw, Cp)
    out = jnp.transpose(out_k, (2, 5, 3, 0, 4, 1))        # (N, Cp, Mh, s, Mw, s)
    out = out.reshape(N, Cp, Mh * s, Mw * s)[:, :Cout, :Ho, :Wo]
    return out


def _reference(x, weight_, bias, *, stride, padding):
    """Pure-JAX reference implementing PyTorch conv_transpose2d + ELR scaling."""
    N, Cin, H, W = x.shape
    _, Cout, kH, kW = weight_.shape
    s, p = stride, padding
    w = weight_ * math.sqrt(2.0 / (Cout * kH * kW))
    Hf, Wf = (H - 1) * s + kH, (W - 1) * s + kW
    out = jnp.zeros((N, Cout, Hf, Wf), x.dtype)
    for kh in range(kH):
        for kw in range(kW):
            contrib = jnp.einsum('nchw,cf->nfhw', x, w[:, :, kh, kw])
            out = out.at[:, :, kh:kh + (H - 1) * s + 1:s,
                               kw:kw + (W - 1) * s + 1:s].add(contrib)
    Ho = (H - 1) * s - 2 * p + kH
    Wo = (W - 1) * s - 2 * p + kW
    out = out[:, :, p:p + Ho, p:p + Wo]
    return out + bias.reshape(1, Cout, 1, 1)


if __name__ == "__main__":
    # ELRConvT2d(in_channels=4, out_channels=8, kernel_size=4, stride=2, padding=1)
    N, Cin, H, W = 2, 4, 16, 16
    Cout, kH, kW = 8, 4, 4
    stride, padding = 2, 1

    key = jax.random.PRNGKey(0)
    k_x, k_w = jax.random.split(key)
    x = jax.random.normal(k_x, (N, Cin, H, W), jnp.float32)
    weight_ = jax.random.normal(k_w, (Cin, Cout, kH, kW), jnp.float32)  # .normal_()
    bias = jnp.zeros((Cout,), jnp.float32)                              # .zero_()

    Ho = (H - 1) * stride - 2 * padding + kH
    Wo = (W - 1) * stride - 2 * padding + kW
    ref = _reference(x, weight_, bias, stride=stride, padding=padding)

    # Exact-precision run (f32 MXU operands) -- tight correctness check.
    out_f32 = elr_conv_transpose2d(x, weight_, bias, stride=stride, padding=padding,
                                   compute_dtype=jnp.float32)
    out_f32 = jax.block_until_ready(out_f32)
    assert out_f32.shape == (N, Cout, Ho, Wo), out_f32.shape
    np.testing.assert_allclose(np.asarray(out_f32), np.asarray(ref),
                               rtol=1e-4, atol=1e-4)

    # Fast path (bf16 MXU operands, f32 accumulation) -- per review for v6e/v7x.
    # Looser tolerance only reflects bf16 operand rounding, not a kernel bug.
    out_bf16 = elr_conv_transpose2d(x, weight_, bias, stride=stride, padding=padding,
                                    compute_dtype=jnp.bfloat16)
    out_bf16 = jax.block_until_ready(out_bf16)
    assert out_bf16.shape == (N, Cout, Ho, Wo), out_bf16.shape
    np.testing.assert_allclose(np.asarray(out_bf16), np.asarray(ref),
                               rtol=5e-2, atol=5e-2)

    print("KERNEL_OK")
</pallas_src>

<mosaic_0001>
module attributes {stable_mosaic.version = 11 : i64} {
  func.func @_gemm_bias_kernel(%arg0: i32, %arg1: i32, %arg2: i32, %arg3: memref<1x1x256x16xf32, #tpu.memory_space<vmem>>, %arg4: memref<1x16x128xf32, #tpu.memory_space<vmem>>, %arg5: memref<1x128xf32, #tpu.memory_space<vmem>>, %arg6: memref<1x1x256x128xf32, #tpu.memory_space<vmem>>) attributes {dimension_semantics = [#tpu.dimension_semantics<parallel>, #tpu.dimension_semantics<parallel>, #tpu.dimension_semantics<parallel>], iteration_bounds = array<i64: 4, 2, 1>, scalar_prefetch = 0 : i64, scratch_operands = 0 : i64, tpu.core_type = #tpu.core_type<tc>, window_params = [{transform_indices = @transform_0, window_bounds = array<i64: 1, 1, 256, 16>}, {transform_indices = @transform_1, window_bounds = array<i64: 1, 16, 128>}, {pipeline_mode = #tpu.pipeline_mode<synchronous>, transform_indices = @transform_2, window_bounds = array<i64: 1, 128>}, {transform_indices = @transform_3, window_bounds = array<i64: 1, 1, 256, 128>}]} {
    %c0 = arith.constant 0 : index
    %c0_0 = arith.constant 0 : index
    %c0_1 = arith.constant 0 : index
    %c0_2 = arith.constant 0 : index
    %0 = vector.load %arg3[%c0, %c0_0, %c0_1, %c0_2] : memref<1x1x256x16xf32, #tpu.memory_space<vmem>>, vector<1x1x256x16xf32>
    %1 = vector.shape_cast %0 : vector<1x1x256x16xf32> to vector<256x16xf32>
    %c0_3 = arith.constant 0 : index
    %c0_4 = arith.constant 0 : index
    %c0_5 = arith.constant 0 : index
    %2 = vector.load %arg4[%c0_3, %c0_4, %c0_5] : memref<1x16x128xf32, #tpu.memory_space<vmem>>, vector<1x16x128xf32>
    %3 = vector.shape_cast %2 : vector<1x16x128xf32> to vector<16x128xf32>
    %cst = arith.constant dense<0.000000e+00> : vector<256x128xf32>
    %4 = tpu.matmul %1, %3, %cst {dimension_numbers = #tpu.dot_dimension_numbers<[1], [0], [0], [1], [0, 0, 1, 1], [], []>} : vector<256x16xf32>, vector<16x128xf32>, vector<256x128xf32> -> vector<256x128xf32>
    %c0_6 = arith.constant 0 : index
    %c0_7 = arith.constant 0 : index
    %5 = vector.load %arg5[%c0_6, %c0_7] : memref<1x128xf32, #tpu.memory_space<vmem>>, vector<1x128xf32>
    %6 = vector.broadcast %5 : vector<1x128xf32> to vector<256x128xf32>
    %7 = arith.addf %4, %6 : vector<256x128xf32>
    %c0_8 = arith.constant 0 : index
    %c0_9 = arith.constant 0 : index
    %c0_10 = arith.constant 0 : index
    %c0_11 = arith.constant 0 : index
    %8 = vector.load %arg6[%c0_8, %c0_9, %c0_10, %c0_11] : memref<1x1x256x128xf32, #tpu.memory_space<vmem>>, vector<1x1x256x128xf32>
    %9 = vector.shape_cast %8 : vector<1x1x256x128xf32> to vector<256x128xf32>
    %10 = vector.shape_cast %7 : vector<256x128xf32> to vector<1x1x256x128xf32>
    tpu.vector_store %arg6[%c0_8, %c0_9, %c0_10, %c0_11], %10 {strides = array<i32>} : memref<1x1x256x128xf32, #tpu.memory_space<vmem>>, vector<1x1x256x128xf32>,
    return
  }
  func.func @transform_0(%arg0: i32, %arg1: i32, %arg2: i32) -> (i32, i32, i32, i32) {
    %c0_i32 = arith.constant 0 : i32
    %c0_i32_0 = arith.constant 0 : i32
    return %arg0, %arg1, %arg2, %c0_i32 : i32, i32, i32, i32
  }
  func.func @transform_1(%arg0: i32, %arg1: i32, %arg2: i32) -> (i32, i32, i32) {
    %c0_i32 = arith.constant 0 : i32
    %c0_i32_0 = arith.constant 0 : i32
    %c0_i32_1 = arith.constant 0 : i32
    return %arg0, %c0_i32, %c0_i32_0 : i32, i32, i32
  }
  func.func @transform_2(%arg0: i32, %arg1: i32, %arg2: i32) -> (i32, i32) {
    %c0_i32 = arith.constant 0 : i32
    %c0_i32_0 = arith.constant 0 : i32
    %c0_i32_1 = arith.constant 0 : i32
    return %c0_i32, %c0_i32_0 : i32, i32
  }
  func.func @transform_3(%arg0: i32, %arg1: i32, %arg2: i32) -> (i32, i32, i32, i32) {
    %c0_i32 = arith.constant 0 : i32
    %c0_i32_0 = arith.constant 0 : i32
    return %arg0, %arg1, %arg2, %c0_i32 : i32, i32, i32, i32
  }
}

</mosaic_0001>

<llo_original>
// kernel: tpu_custom_call.1
$region0: #{tpu_custom_call.1}
  #allocation0 [shape = 'u32[]', space=smem, size = 0x4, offset = 0x4, fixed_abs, tag = 'smem constant byte address 0x4 - core index']
  #allocation1 [shape = 'u32[72,128]{1,0:T(1,128)}', space=vmem, size = 0x9000, scoped, tag = 'internal scratch']
  %s0 = inlined_call_operand.vmem [shape: f32[4,2,256,16], index: 0, kind: input, shape index: {}]
  %s1 = inlined_call_operand.vmem [shape: f32[4,16,128], index: 1, kind: input, shape index: {}]
  %s2 = inlined_call_operand.vmem [shape: f32[1,128], index: 2, kind: input, shape index: {}]
  %s3 = inlined_call_operand.hbm [shape: f32[4,2,256,128], index: 3, kind: output, shape index: {}]
  %s4 = sld [smem:[#allocation0]]
  $region45: #{tpu_custom_call.1} parent=0
    _
  %s6 = ssub.s32 1, %s4
  %s7 = scalar_select 0, %s6, %s4
  $region1: #{tpu_custom_call.1} parent=0
    #allocation2 [shape = 'u8[262144]{0}', space=vmem, size = 0x40000, scoped, tag = 'output window, operand 0']
    #allocation3 [shape = 's32[2]{0}', space=sflag, size = 0x8, scoped, tag = 'scoped memory for tpu_custom_call.1']
    %8 = vsyncpa [#allocation3], 0
    %s9 = scalar_lea.sflag [#allocation3], 1
    %10 = vsyncpa %s9, 0
    loop: start=0, step=1, limit=10
    $region2: #{tpu_custom_call.1} parent=1 // loop_pre_header
      _
    $region3: #{tpu_custom_call.1} parent=1 // loop_header
      %s12 = sphi 0, %s16
      %p13 = scmp.ge.s32.totalorder %s12, 10
      %s19 = sphi 0, %s38
      %s20 = sphi 0, %s34
      %s21 = sphi 0, %s30
      %s22 = sphi 0, %s19
      %s23 = sphi 0, %s20
      %s24 = sphi 0, %s21
      %s25 = sphi 0, %s22
      %s26 = sphi 0, %s23
      %s27 = sphi 0, %s24
      %s45 = sphi 0, %s47
      %s48 = sphi 0, %s45
      %s49 = sphi 0, %s48
      %s65 = sphi 0, %s49
      %s71 = sphi 0, %s73
      %s74 = sphi 0, %s71
      %s75 = sphi 0, %s74
      %s91 = sphi 0, %s75
      %s95 = sphi 0, %s95
      %s97 = sphi 0, %s95
      %s98 = sphi 0, %s97
      %s112 = sphi 0, %s98
      %s122 = sphi 0, %s124
      %s125 = sphi 0, %s122
      %s126 = sphi 0, %s125
      %s142 = sphi 0, %s126
    $region4: #{tpu_custom_call.1} parent=1 // loop_header_branch
      %15 = sbr.rel (%p13) target = $region8
    $region5: #{tpu_custom_call.1} parent=1 // loop_body
      %s17 = ssub.s32 %s12, 1
      %s18 = ssub.s32 %s12, 2
      %s28 = sadd.s32 1, %s21
      %p29 = scmp.ge.s32.totalorder %s28, 1
      %s30 = scalar_select %p29, 0, %s28
      %s31 = sadd.s32 1, %s20
      %s32 = scalar_select %p29, %s31, %s20
      %p33 = scmp.ge.s32.totalorder %s32, 2
      %s34 = scalar_select %p33, 0, %s32
      %s35 = sadd.s32 1, %s19
      %s36 = scalar_select %p33, %s35, %s19
      %p37 = scmp.ge.s32.totalorder %s36, 4
      %s38 = scalar_select %p37, 0, %s36
      %s39 = ssub.s32 %s19, %s38
      %s40 = ssub.s32 %s20, %s34
      %s41 = sor.u32 %s39, %s40
      %s42 = ssub.s32 %s21, %s30
      %s43 = sor.u32 %s41, %s42
      %p44 = scmp.eq.s32.totalorder %s43, 0
      %s46 = sadd.s32 %s45, 1
      %s47 = scalar_select %p44, %s45, %s46
      %p50 = pneg %p44
      %p51 = scmp.eq.s32.totalorder %s12, 7
      %p52 = por %p50, %p51
      %p53 = scmp.ne.s32.totalorder %s45, %s48
      %p54 = scmp.eq.s32.totalorder %s12, 0
      %p55 = por %p53, %p54
      %p56 = scmp.ne.s32.totalorder %s45, %s48
      %p57 = scmp.eq.s32.totalorder %s17, 7
      %p58 = por %p56, %p57
      %p59 = scmp.ne.s32.totalorder %s48, %s49
      %p60 = scmp.eq.s32.totalorder %s17, 0
      %p61 = por %p59, %p60
      %p62 = scmp.ne.s32.totalorder %s48, %s49
      %p63 = scmp.eq.s32.totalorder %s18, 7
      %p64 = por %p62, %p63
      %p66 = scmp.ne.s32.totalorder %s49, %s65
      %p67 = scmp.eq.s32.totalorder %s18, 0
      %p68 = por %p66, %p67
      %s69 = ssub.s32 %s19, %s38
      %p70 = scmp.eq.s32.totalorder %s69, 0
      %s72 = sadd.s32 %s71, 1
      %s73 = scalar_select %p70, %s71, %s72
      %p76 = pneg %p70
      %p77 = scmp.eq.s32.totalorder %s12, 7
      %p78 = por %p76, %p77
      %p79 = scmp.ne.s32.totalorder %s71, %s74
      %p80 = scmp.eq.s32.totalorder %s12, 0
      %p81 = por %p79, %p80
      %p82 = scmp.ne.s32.totalorder %s71, %s74
      %p83 = scmp.eq.s32.totalorder %s17, 7
      %p84 = por %p82, %p83
      %p85 = scmp.ne.s32.totalorder %s74, %s75
      %p86 = scmp.eq.s32.totalorder %s17, 0
      %p87 = por %p85, %p86
      %p88 = scmp.ne.s32.totalorder %s74, %s75
      %p89 = scmp.eq.s32.totalorder %s18, 7
      %p90 = por %p88, %p89
      %p92 = scmp.ne.s32.totalorder %s75, %s91
      %p93 = scmp.eq.s32.totalorder %s18, 0
      %p94 = por %p92, %p93
      %s96 = sadd.s32 %s95, 1
      %p99 = scmp.eq.s32.totalorder %s12, 7
      %p100 = scmp.ne.s32.totalorder %s95, %s97
      %p101 = scmp.eq.s32.totalorder %s12, 0
      %p102 = por %p100, %p101
      %p103 = scmp.ne.s32.totalorder %s95, %s97
      %p104 = scmp.eq.s32.totalorder %s17, 7
      %p105 = por %p103, %p104
      %p106 = scmp.ne.s32.totalorder %s97, %s98
      %p107 = scmp.eq.s32.totalorder %s17, 0
      %p108 = por %p106, %p107
      %p109 = scmp.ne.s32.totalorder %s97, %s98
      %p110 = scmp.eq.s32.totalorder %s18, 7
      %p111 = por %p109, %p110
      %p113 = scmp.ne.s32.totalorder %s98, %s112
      %p114 = scmp.eq.s32.totalorder %s18, 0
      %p115 = por %p113, %p114
      %s116 = ssub.s32 %s19, %s38
      %s117 = ssub.s32 %s20, %s34
      %s118 = sor.u32 %s116, %s117
      %s119 = ssub.s32 %s21, %s30
      %s120 = sor.u32 %s118, %s119
      %p121 = scmp.eq.s32.totalorder %s120, 0
      %s123 = sadd.s32 %s122, 1
      %s124 = scalar_select %p121, %s122, %s123
      %p127 = pneg %p121
      %p128 = scmp.eq.s32.totalorder %s12, 7
      %p129 = por %p127, %p128
      %p130 = scmp.ne.s32.totalorder %s122, %s125
      %p131 = scmp.eq.s32.totalorder %s12, 0
      %p132 = por %p130, %p131
      %p133 = scmp.ne.s32.totalorder %s122, %s125
      %p134 = scmp.eq.s32.totalorder %s17, 7
      %p135 = por %p133, %p134
      %p136 = scmp.ne.s32.totalorder %s125, %s126
      %p137 = scmp.eq.s32.totalorder %s17, 0
      %p138 = por %p136, %p137
      %p139 = scmp.ne.s32.totalorder %s125, %s126
      %p140 = scmp.eq.s32.totalorder %s18, 7
      %p141 = por %p139, %p140
      %p143 = scmp.ne.s32.totalorder %s126, %s142
      %p144 = scmp.eq.s32.totalorder %s18, 0
      %p145 = por %p143, %p144
      %p146 = scmp.le.s32.totalorder 1, %s12
      %p147 = scmp.lt.s32.totalorder %s12, 9
      %p148 = pnand %p146, %p147
      %p149 = pneg %p148
      // Predicated region
      $region9: #{tpu_custom_call.1} parent=5 // pred_check
        _
      $region10: #{tpu_custom_call.1} parent=5 // pred_check_branch
        %151 = sbr.rel (%p148) target = $region12
      $region11: #{tpu_custom_call.1} parent=5 // pred_region
        %s152 = ssub.s32 %s12, 1
        // Predicated region
        $region13: #{tpu_custom_call.1} parent=11 // pred_check
          %p153 = pneg %p108
        $region14: #{tpu_custom_call.1} parent=11 // pred_check_branch
          %155 = sbr.rel (%p153) target = $region16
        $region15: #{tpu_custom_call.1} parent=11 // pred_region
          _
        $region16: #{tpu_custom_call.1} parent=11 // pred_fallthru
          _
      $region12: #{tpu_custom_call.1} parent=5 // pred_fallthru
        _
      %p156 = scmp.lt.s32.totalorder %s12, 8
      // Predicated region
      $region17: #{tpu_custom_call.1} parent=5 // pred_check
        %p157 = pneg %p156
      $region18: #{tpu_custom_call.1} parent=5 // pred_check_branch
        %159 = sbr.rel (%p157) target = $region20
      $region19: #{tpu_custom_call.1} parent=5 // pred_region
        // Predicated region
        $region21: #{tpu_custom_call.1} parent=19 // pred_check
          %p160 = pneg %p55
        $region22: #{tpu_custom_call.1} parent=19 // pred_check_branch
          %162 = sbr.rel (%p160) target = $region24
        $region23: #{tpu_custom_call.1} parent=19 // pred_region
          %s163 = smul.u32 32, %s21
          %p164 = scmp.lt.s32.totalorder %s19, 3
          %s165 = scalar_select %p164, %s19, 3
          %p166 = scmp.lt.s32.totalorder %s20, 1
          %s167 = scalar_select %p166, %s20, 1
          %p168 = scmp.lt.s32.totalorder %s163, 31
          %s169 = scalar_select %p168, %s163, 31
          %s170 = smul.addr %s167, 32
          %s171 = sadd.s32 %s169, %s170
          %s172 = smul.addr %s165, 64
          %s173 = sadd.s32 %s171, %s172
          %s174 = smul.addr %s173, 8
          %s175 = scalar_lea.vmem %s0, %s174
          %s176 = smul.u32 32, %s21
        $region24: #{tpu_custom_call.1} parent=19 // pred_fallthru
          _
        // Predicated region
        $region25: #{tpu_custom_call.1} parent=19 // pred_check
          %p177 = pneg %p81
        $region26: #{tpu_custom_call.1} parent=19 // pred_check_branch
          %179 = sbr.rel (%p177) target = $region28
        $region27: #{tpu_custom_call.1} parent=19 // pred_region
          %p180 = scmp.lt.s32.totalorder %s19, 3
          %s181 = scalar_select %p180, %s19, 3
          %s182 = smul.addr %s181, 2
          %s183 = smul.addr %s182, 8
          %s184 = scalar_lea.vmem %s1, %s183
        $region28: #{tpu_custom_call.1} parent=19 // pred_fallthru
          _
      $region20: #{tpu_custom_call.1} parent=5 // pred_fallthru
        _
      %p185 = scmp.le.s32.totalorder 1, %s12
      %p186 = scmp.lt.s32.totalorder %s12, 9
      %p187 = pnand %p185, %p186
      %p188 = pneg %p187
      // Predicated region
      $region29: #{tpu_custom_call.1} parent=5 // pred_check
        _
      $region30: #{tpu_custom_call.1} parent=5 // pred_check_branch
        %190 = sbr.rel (%p187) target = $region32
      $region31: #{tpu_custom_call.1} parent=5 // pred_region
        %s191 = ssub.s32 %s12, 1
        %s192 = smul.u32 32, %s24
        %p193 = scmp.lt.s32.totalorder %s22, 3
        %s194 = scalar_select %p193, %s22, 3
        %p195 = scmp.lt.s32.totalorder %s23, 1
        %s196 = scalar_select %p195, %s23, 1
        %p197 = scmp.lt.s32.totalorder %s192, 31
        %s198 = scalar_select %p197, %s192, 31
        %s199 = smul.addr %s196, 32
        %s200 = sadd.s32 %s198, %s199
        %s201 = smul.addr %s194, 64
        %s202 = sadd.s32 %s200, %s201
        %s203 = smul.addr %s202, 8
        %s204 = scalar_lea.vmem %s0, %s203
        %p205 = pneg %p61
        %p206 = pneg %p58
        %p207 = scmp.lt.s32.totalorder %s22, 3
        %s208 = scalar_select %p207, %s22, 3
        %s209 = smul.addr %s208, 2
        %s210 = smul.addr %s209, 8
        %s211 = scalar_lea.vmem %s1, %s210
        %p212 = pneg %p87
        %p213 = pneg %p84
        %p214 = pneg %p108
        %p215 = pneg %p105
        %p216 = pneg %p138
        %p217 = pneg %p135
        %s218 = sand.u32 %s125, 1
        %s219 = scalar_lea.sflag [#allocation3], %s218
        %s220 = sand.u32 %s125, 1
        %s221 = smul.addr %s220, 256
        %s222 = scalar_lea.vmem [#allocation2], %s221
        %s223 = smul.u32 32, %s24
        %p224 = scmp.lt.s32.totalorder %s22, 3
        %s225 = scalar_select %p224, %s22, 3
        %p226 = scmp.lt.s32.totalorder %s23, 1
        %s227 = scalar_select %p226, %s23, 1
        %p228 = scmp.lt.s32.totalorder %s223, 31
        %s229 = scalar_select %p228, %s223, 31
        %s230 = smul.addr %s227, 32
        %s231 = sadd.s32 %s229, %s230
        %s232 = smul.addr %s225, 64
        %s233 = sadd.s32 %s231, %s232
        %s234 = smul.addr %s233, 8
        %s235 = scalar_lea.vmem %s0, %s234
        %s236 = smul.u32 32, %s24
        %p237 = scmp.lt.s32.totalorder %s22, 3
        %s238 = scalar_select %p237, %s22, 3
        %s239 = smul.addr %s238, 2
        %s240 = smul.addr %s239, 8
        %s241 = scalar_lea.vmem %s1, %s240
        %s242 = smul.u32 32, %s24
        %v243 = vld [vmem:[%s235] sm:$0xff]
        %v244 = vld [vmem:[%s235 + $0x8] sm:$0xff]
        %v245 = vld [vmem:[%s235 + $0x10] sm:$0xff]
        %v246 = vld [vmem:[%s235 + $0x18] sm:$0xff]
        %v247 = vld [vmem:[%s235 + $0x20] sm:$0xff]
        %v248 = vld [vmem:[%s235 + $0x28] sm:$0xff]
        %v249 = vld [vmem:[%s235 + $0x30] sm:$0xff]
        %v250 = vld [vmem:[%s235 + $0x38] sm:$0xff]
        %v251 = vld [vmem:[%s235 + $0x40] sm:$0xff]
        %v252 = vld [vmem:[%s235 + $0x48] sm:$0xff]
        %v253 = vld [vmem:[%s235 + $0x50] sm:$0xff]
        %v254 = vld [vmem:[%s235 + $0x58] sm:$0xff]
        %v255 = vld [vmem:[%s235 + $0x60] sm:$0xff]
        %v256 = vld [vmem:[%s235 + $0x68] sm:$0xff]
        %v257 = vld [vmem:[%s235 + $0x70] sm:$0xff]
        %v258 = vld [vmem:[%s235 + $0x78] sm:$0xff]
        %v259 = vld [vmem:[%s235 + $0x80] sm:$0xff]
        %v260 = vld [vmem:[%s235 + $0x88] sm:$0xff]
        %v261 = vld [vmem:[%s235 + $0x90] sm:$0xff]
        %v262 = vld [vmem:[%s235 + $0x98] sm:$0xff]
        %v263 = vld [vmem:[%s235 + $0xa0] sm:$0xff]
        %v264 = vld [vmem:[%s235 + $0xa8] sm:$0xff]
        %v265 = vld [vmem:[%s235 + $0xb0] sm:$0xff]
        %v266 = vld [vmem:[%s235 + $0xb8] sm:$0xff]
        %v267 = vld [vmem:[%s235 + $0xc0] sm:$0xff]
        %v268 = vld [vmem:[%s235 + $0xc8] sm:$0xff]
        %v269 = vld [vmem:[%s235 + $0xd0] sm:$0xff]
        %v270 = vld [vmem:[%s235 + $0xd8] sm:$0xff]
        %v271 = vld [vmem:[%s235 + $0xe0] sm:$0xff]
        %v272 = vld [vmem:[%s235 + $0xe8] sm:$0xff]
        %v273 = vld [vmem:[%s235 + $0xf0] sm:$0xff]
        %v274 = vld [vmem:[%s235 + $0xf8] sm:$0xff]
        %v275 = vld [vmem:[%s241] sm:$0xff]
        %v276 = vld [vmem:[%s241 + $0x8] sm:$0xff]
        %v277 = vld [vmem:[%s2] sm:$0x1]
        %v279 = vperm.slane %v277, 0
        %vm281 = vcmask 130048
        %v283 = vsel %vm281, %v243, 0
        %v286 = vsel %vm281, %v244, 0
        %v289 = vsel %vm281, %v245, 0
        %v292 = vsel %vm281, %v246, 0
        %v295 = vsel %vm281, %v247, 0
        %v298 = vsel %vm281, %v248, 0
        %v301 = vsel %vm281, %v249, 0
        %v304 = vsel %vm281, %v250, 0
        %v307 = vsel %vm281, %v251, 0
        %v310 = vsel %vm281, %v252, 0
        %v313 = vsel %vm281, %v253, 0
        %v316 = vsel %vm281, %v254, 0
        %v319 = vsel %vm281, %v255, 0
        %v322 = vsel %vm281, %v256, 0
        %v325 = vsel %vm281, %v257, 0
        %v328 = vsel %vm281, %v258, 0
        %v331 = vsel %vm281, %v259, 0
        %v334 = vsel %vm281, %v260, 0
        %v337 = vsel %vm281, %v261, 0
        %v340 = vsel %vm281, %v262, 0
        %v343 = vsel %vm281, %v263, 0
        %v346 = vsel %vm281, %v264, 0
        %v349 = vsel %vm281, %v265, 0
        %v352 = vsel %vm281, %v266, 0
        %v355 = vsel %vm281, %v267, 0
        %v358 = vsel %vm281, %v268, 0
        %v361 = vsel %vm281, %v269, 0
        %v364 = vsel %vm281, %v270, 0
        %v367 = vsel %vm281, %v271, 0
        %v370 = vsel %vm281, %v272, 0
        %v373 = vsel %vm281, %v273, 0
        %v376 = vsel %vm281, %v274, 0
        %378 = vmatpush.msra.mxu0 0.0
        %379 = vmatpush.msra.mxu0 0.0
        %380 = vmatpush.msra.mxu0 0.0
        %381 = vmatpush.msra.mxu0 0.0
        %382 = vmatpush.msra.mxu0 0.0
        %383 = vmatpush.msra.mxu0 0.0
        %384 = vmatpush.msra.mxu0 0.0
        %385 = vmatpush.msra.mxu0 0.0
        %386 = vmatpush.msra.mxu0 0.0
        %387 = vmatpush.msra.mxu0 0.0
        %388 = vmatpush.msra.mxu0 0.0
        %389 = vmatpush.msra.mxu0 0.0
        %390 = vmatpush.msra.mxu0 0.0
        %391 = vmatpush.msra.mxu0 0.0
        %392 = vmatpush.msra.mxu0 %v276
        %393 = vmatpush.msra.mxu0 %v275
        %394 = vmatmul.f32.gmra.mxu0 %v283
        %v395 = vpop.f32.mrf.mxu0
        %v396 = vadd.f32 %v279, %v395
        %397 = vmatmul.f32.gmra.mxu0 %v286
        %v398 = vpop.f32.mrf.mxu0
        %v399 = vadd.f32 %v279, %v398
        %400 = vmatmul.f32.gmra.mxu0 %v289
        %v401 = vpop.f32.mrf.mxu0
        %v402 = vadd.f32 %v279, %v401
        %403 = vmatmul.f32.gmra.mxu0 %v292
        %v404 = vpop.f32.mrf.mxu0
        %v405 = vadd.f32 %v279, %v404
        %406 = vmatmul.f32.gmra.mxu0 %v295
        %v407 = vpop.f32.mrf.mxu0
        %v408 = vadd.f32 %v279, %v407
        %409 = vmatmul.f32.gmra.mxu0 %v298
        %v410 = vpop.f32.mrf.mxu0
        %v411 = vadd.f32 %v279, %v410
        %412 = vmatmul.f32.gmra.mxu0 %v301
        %v413 = vpop.f32.mrf.mxu0
        %v414 = vadd.f32 %v279, %v413
        %415 = vmatmul.f32.gmra.mxu0 %v304
        %v416 = vpop.f32.mrf.mxu0
        %v417 = vadd.f32 %v279, %v416
        %418 = vmatmul.f32.gmra.mxu0 %v307
        %v419 = vpop.f32.mrf.mxu0
        %v420 = vadd.f32 %v279, %v419
        %421 = vmatmul.f32.gmra.mxu0 %v310
        %v422 = vpop.f32.mrf.mxu0
        %v423 = vadd.f32 %v279, %v422
        %424 = vmatmul.f32.gmra.mxu0 %v313
        %v425 = vpop.f32.mrf.mxu0
        %v426 = vadd.f32 %v279, %v425
        %427 = vmatmul.f32.gmra.mxu0 %v316
        %v428 = vpop.f32.mrf.mxu0
        %v429 = vadd.f32 %v279, %v428
        %430 = vmatmul.f32.gmra.mxu0 %v319
        %v431 = vpop.f32.mrf.mxu0
        %v432 = vadd.f32 %v279, %v431
        %433 = vmatmul.f32.gmra.mxu0 %v322
        %v434 = vpop.f32.mrf.mxu0
        %v435 = vadd.f32 %v279, %v434
        %436 = vmatmul.f32.gmra.mxu0 %v325
        %v437 = vpop.f32.mrf.mxu0
        %v438 = vadd.f32 %v279, %v437
        %439 = vmatmul.f32.gmra.mxu0 %v328
        %v440 = vpop.f32.mrf.mxu0
        %v441 = vadd.f32 %v279, %v440
        %442 = vmatmul.f32.gmra.mxu0 %v331
        %v443 = vpop.f32.mrf.mxu0
        %v444 = vadd.f32 %v279, %v443
        %445 = vmatmul.f32.gmra.mxu0 %v334
        %v446 = vpop.f32.mrf.mxu0
        %v447 = vadd.f32 %v279, %v446
        %448 = vmatmul.f32.gmra.mxu0 %v337
        %v449 = vpop.f32.mrf.mxu0
        %v450 = vadd.f32 %v279, %v449
        %451 = vmatmul.f32.gmra.mxu0 %v340
        %v452 = vpop.f32.mrf.mxu0
        %v453 = vadd.f32 %v279, %v452
        %454 = vmatmul.f32.gmra.mxu0 %v343
        %v455 = vpop.f32.mrf.mxu0
        %v456 = vadd.f32 %v279, %v455
        %457 = vmatmul.f32.gmra.mxu0 %v346
        %v458 = vpop.f32.mrf.mxu0
        %v459 = vadd.f32 %v279, %v458
        %460 = vmatmul.f32.gmra.mxu0 %v349
        %v461 = vpop.f32.mrf.mxu0
        %v462 = vadd.f32 %v279, %v461
        %463 = vmatmul.f32.gmra.mxu0 %v352
        %v464 = vpop.f32.mrf.mxu0
        %v465 = vadd.f32 %v279, %v464
        %466 = vmatmul.f32.gmra.mxu0 %v355
        %v467 = vpop.f32.mrf.mxu0
        %v468 = vadd.f32 %v279, %v467
        %469 = vmatmul.f32.gmra.mxu0 %v358
        %v470 = vpop.f32.mrf.mxu0
        %v471 = vadd.f32 %v279, %v470
        %472 = vmatmul.f32.gmra.mxu0 %v361
        %v473 = vpop.f32.mrf.mxu0
        %v474 = vadd.f32 %v279, %v473
        %475 = vmatmul.f32.gmra.mxu0 %v364
        %v476 = vpop.f32.mrf.mxu0
        %v477 = vadd.f32 %v279, %v476
        %478 = vmatmul.f32.gmra.mxu0 %v367
        %v479 = vpop.f32.mrf.mxu0
        %v480 = vadd.f32 %v279, %v479
        %481 = vmatmul.f32.gmra.mxu0 %v370
        %v482 = vpop.f32.mrf.mxu0
        %v483 = vadd.f32 %v279, %v482
        %484 = vmatmul.f32.gmra.mxu0 %v373
        %v485 = vpop.f32.mrf.mxu0
        %v486 = vadd.f32 %v279, %v485
        %487 = vmatmul.f32.gmra.mxu0 %v376
        %v488 = vpop.f32.mrf.mxu0
        %v489 = vadd.f32 %v279, %v488
        %490 = vdwg.mxu0
        %491 = vst [vmem:[%s222] sm:$0xff] %v396
        %492 = vst [vmem:[%s222 + $0x8] sm:$0xff] %v399
        %493 = vst [vmem:[%s222 + $0x10] sm:$0xff] %v402
        %494 = vst [vmem:[%s222 + $0x18] sm:$0xff] %v405
        %495 = vst [vmem:[%s222 + $0x20] sm:$0xff] %v408
        %496 = vst [vmem:[%s222 + $0x28] sm:$0xff] %v411
        %497 = vst [vmem:[%s222 + $0x30] sm:$0xff] %v414
        %498 = vst [vmem:[%s222 + $0x38] sm:$0xff] %v417
        %499 = vst [vmem:[%s222 + $0x40] sm:$0xff] %v420
        %500 = vst [vmem:[%s222 + $0x48] sm:$0xff] %v423
        %501 = vst [vmem:[%s222 + $0x50] sm:$0xff] %v426
        %502 = vst [vmem:[%s222 + $0x58] sm:$0xff] %v429
        %503 = vst [vmem:[%s222 + $0x60] sm:$0xff] %v432
        %504 = vst [vmem:[%s222 + $0x68] sm:$0xff] %v435
        %505 = vst [vmem:[%s222 + $0x70] sm:$0xff] %v438
        %506 = vst [vmem:[%s222 + $0x78] sm:$0xff] %v441
        %507 = vst [vmem:[%s222 + $0x80] sm:$0xff] %v444
        %508 = vst [vmem:[%s222 + $0x88] sm:$0xff] %v447
        %509 = vst [vmem:[%s222 + $0x90] sm:$0xff] %v450
        %510 = vst [vmem:[%s222 + $0x98] sm:$0xff] %v453
        %511 = vst [vmem:[%s222 + $0xa0] sm:$0xff] %v456
        %512 = vst [vmem:[%s222 + $0xa8] sm:$0xff] %v459
        %513 = vst [vmem:[%s222 + $0xb0] sm:$0xff] %v462
        %514 = vst [vmem:[%s222 + $0xb8] sm:$0xff] %v465
        %515 = vst [vmem:[%s222 + $0xc0] sm:$0xff] %v468
        %516 = vst [vmem:[%s222 + $0xc8] sm:$0xff] %v471
        %517 = vst [vmem:[%s222 + $0xd0] sm:$0xff] %v474
        %518 = vst [vmem:[%s222 + $0xd8] sm:$0xff] %v477
        %519 = vst [vmem:[%s222 + $0xe0] sm:$0xff] %v480
        %520 = vst [vmem:[%s222 + $0xe8] sm:$0xff] %v483
        %521 = vst [vmem:[%s222 + $0xf0] sm:$0xff] %v486
        %522 = vst [vmem:[%s222 + $0xf8] sm:$0xff] %v489
        %s523 = sand.u32 %s125, 1
        %s524 = scalar_lea.sflag [#allocation3], %s523
        %s525 = sand.u32 %s125, 1
        %s526 = smul.addr %s525, 256
        %s527 = scalar_lea.vmem [#allocation2], %s526
        // Predicated region
        $region33: #{tpu_custom_call.1} parent=31 // pred_check
          %p528 = pneg %p135
        $region34: #{tpu_custom_call.1} parent=31 // pred_check_branch
          %530 = sbr.rel (%p528) target = $region36
        $region35: #{tpu_custom_call.1} parent=31 // pred_region
          %s531 = smul.u32 32, %s24
          %533 = vsyncadd %s524, 0
          %s534 = smul.addr %s23, 32
          %s535 = sadd.s32 %s531, %s534
          %s536 = smul.addr %s22, 64
          %s537 = sadd.s32 %s535, %s536
          %s538 = smul.addr %s537, 8
          %s539 = scalar_lea.hbm %s3, %s538
          %s540 = sshll.u32 %s527, 4
          %s541 = int_to_ptr.vmem [resolvable:$true] %s540
          %s542 = sshll.u32 %s539, 4
          %s543 = int_to_ptr.hbm [resolvable:$true] %s542
          %548 = dma.vmem_to_hbm [thread:$0]  %s541, 4096, %s543, %s524, 128, 128, 8
        $region36: #{tpu_custom_call.1} parent=31 // pred_fallthru
          _
      $region32: #{tpu_custom_call.1} parent=5 // pred_fallthru
        _
      %p549 = scmp.le.s32.totalorder 2, %s12
      // Predicated region
      $region37: #{tpu_custom_call.1} parent=5 // pred_check
        %p550 = pneg %p549
      $region38: #{tpu_custom_call.1} parent=5 // pred_check_branch
        %552 = sbr.rel (%p550) target = $region40
      $region39: #{tpu_custom_call.1} parent=5 // pred_region
        %s553 = ssub.s32 %s12, 2
        // Predicated region
        $region41: #{tpu_custom_call.1} parent=39 // pred_check
          %p554 = pneg %p141
        $region42: #{tpu_custom_call.1} parent=39 // pred_check_branch
          %556 = sbr.rel (%p554) target = $region44
        $region43: #{tpu_custom_call.1} parent=39 // pred_region
          %s557 = sand.u32 %s126, 1
          %s558 = scalar_lea.sflag [#allocation3], %s557
          %s559 = sand.u32 %s126, 1
          %s560 = smul.addr %s559, 256
          %s561 = scalar_lea.vmem [#allocation2], %s560
          %563 = dma.done %s558, 4096
        $region44: #{tpu_custom_call.1} parent=39 // pred_fallthru
          _
      $region40: #{tpu_custom_call.1} parent=5 // pred_fallthru
        _
    $region6: #{tpu_custom_call.1} parent=1 // loop_footer
      %s16 = sadd.s32 1, %s12
    $region7: #{tpu_custom_call.1} parent=1 // loop_footer_branch
      %11 = sbr.rel target = $region3
    $region8: #{tpu_custom_call.1} parent=1 // loop_exit
      _
    %564 = vsyncpa [#allocation3], 1
    %s565 = scalar_lea.sflag [#allocation3], 1
    %566 = vsyncpa %s565, 1

</llo_original>
